<compile_context>
chip_gen: v7x
topology: tpu7x:2x2x1
jax: 0.10.0
libtpu: 0.0.40
codegen_flags: <defaults>
</compile_context>

<pallas_src>
import jax
import jax.numpy as jnp
from jax.experimental import pallas as pl
from jax.experimental.pallas import tpu as pltpu

_LANE = 128
_LANE_CANDIDATES = (16384, 8192, 4096, 2048, 1024, 512, 256, 128)
# Sublane granularity per element size (f32 -> 8, bf16 -> 16, int8/fp8 -> 32).
_SUBLANE = {4: 8, 2: 16, 1: 32}
# ~4 MiB blocks: 2 in + 2 out double buffers = 16 MiB of VMEM.
_TARGET_BLOCK_BYTES = 4 * 1024 * 1024
# Explicit scoped-VMEM limit: > v5e's 16 MiB default, < v7x's 64 MiB physical.
_VMEM_LIMIT_BYTES = 32 * 1024 * 1024
# Below this, pallas_call prologue dominates a memcpy: return x directly.
_SMALL_BYTES = 256 * 1024
# Ragged (non-128-multiple) sizes up to this fit a single full-extent block.
_FULL_EXTENT_MAX_BYTES = 4 * 1024 * 1024


def _identity_kernel(x_ref, o_ref):
    # forward() returns x unchanged: elementwise identity copy of the block.
    o_ref[...] = x_ref[...]


def _copy_2d(x2d):
    """Identity-copy a lane-dense (rows, lanes) slab with large aliased blocks."""
    rows, lanes = x2d.shape
    itemsize = x2d.dtype.itemsize
    sub = _SUBLANE.get(itemsize, 8)

    max_rows = max(sub, _TARGET_BLOCK_BYTES // (lanes * itemsize))
    if rows <= max_rows:
        block_rows = rows  # full-extent rows: always layout-legal
    else:
        block_rows = max(sub, (max_rows // sub) * sub)

    # v7x has 2 TensorCores: prefer an even number of "parallel" grid steps so
    # both cores get balanced work.  Harmless on single-core v5e/v6e.
    steps = -(-rows // block_rows)
    if steps % 2 == 1:
        cand = -(-rows // (steps + 1))
        cand = ((cand + sub - 1) // sub) * sub  # sublane-aligned block rows
        if sub <= cand < rows and (-(-rows // cand)) % 2 == 0:
            block_rows = cand

    grid = (pl.cdiv(rows, block_rows),)
    return pl.pallas_call(
        _identity_kernel,
        out_shape=jax.ShapeDtypeStruct((rows, lanes), x2d.dtype),
        grid_spec=pltpu.PrefetchScalarGridSpec(
            num_scalar_prefetch=0,
            grid=grid,
            in_specs=[pl.BlockSpec((block_rows, lanes), lambda i: (i, 0))],
            out_specs=pl.BlockSpec((block_rows, lanes), lambda i: (i, 0)),
        ),
        # Identity copy: let the output reuse the input HBM buffer.  When the
        # caller donates x, this removes the extra output allocation entirely.
        input_output_aliases={0: 0},
        cost_estimate=pl.CostEstimate(
            flops=0, transcendentals=0,
            bytes_accessed=2 * rows * lanes * itemsize),
        compiler_params=pltpu.CompilerParams(
            dimension_semantics=("parallel",),
            vmem_limit_bytes=_VMEM_LIMIT_BYTES),
    )(x2d)


def _copy_full_extent(flat):
    """Single full-extent (1, n) block — legal for any n, no pad/concat/slice."""
    n = flat.shape[0]
    x2d = flat.reshape(1, n)
    out = pl.pallas_call(
        _identity_kernel,
        out_shape=jax.ShapeDtypeStruct((1, n), flat.dtype),
        grid_spec=pltpu.PrefetchScalarGridSpec(
            num_scalar_prefetch=0,
            grid=(1,),
            in_specs=[pl.BlockSpec((1, n), lambda i: (0, 0))],
            out_specs=pl.BlockSpec((1, n), lambda i: (0, 0)),
        ),
        input_output_aliases={0: 0},
        cost_estimate=pl.CostEstimate(
            flops=0, transcendentals=0,
            bytes_accessed=2 * n * flat.dtype.itemsize),
        compiler_params=pltpu.CompilerParams(
            vmem_limit_bytes=_VMEM_LIMIT_BYTES),
    )(x2d)
    return out.reshape(n)


def log_softmax_module_forward(x, *, force_pallas=False):
    """Pallas implementation of LogSoftmax.forward (reference forward() is identity)."""
    # TODO(synk): the reference forward() also does a host-side print; that
    # side effect has no Pallas equivalent and is intentionally omitted.
    orig_shape = x.shape
    n = x.size
    nbytes = n * x.dtype.itemsize

    if n == 0:
        return x

    # Tiny activations (e.g. small conv feature maps): kernel launch +
    # pipeline prologue dominates the copy, and forward() is identity, so
    # returning x is exact and free.
    if not force_pallas and nbytes < _SMALL_BYTES:
        return x

    flat = x.reshape(-1)

    if n % _LANE == 0:
        # Aligned fast path: widest lane-dense factorization of n.  No
        # padding and no trailing slice — the only HBM traffic is the
        # kernel's own (aliased) read + write.
        lanes = next(c for c in _LANE_CANDIDATES if n % c == 0)
        out2d = _copy_2d(flat.reshape(n // lanes, lanes))
        return out2d.reshape(orig_shape)

    if nbytes <= _FULL_EXTENT_MAX_BYTES:
        # Ragged but VMEM-resident: one full-extent block, zero extra traffic.
        return _copy_full_extent(flat).reshape(orig_shape)

    # Large and not a multiple of 128: identity is the exact semantics, and a
    # pad/concat/slice dance would triple HBM traffic, so return x as-is.
    # TODO(synk): if a materialized copy is ever required here, copy the
    # 128-aligned body via _copy_2d and patch the <128-element tail with
    # lax.dynamic_update_slice instead of pad+slice.
    return x


if __name__ == "__main__":
    key = jax.random.PRNGKey(0)
    # Small NCHW input consistent with a conv-style activation module.
    x = jax.random.normal(key, (2, 4, 16, 16), dtype=jnp.float32)

    # Default path: tiny input short-circuits to the identity (return x).
    y_fast = log_softmax_module_forward(x)
    # Kernel path: force the Pallas copy so the kernel itself is exercised.
    y_kernel = log_softmax_module_forward(x, force_pallas=True)
    y_fast, y_kernel = jax.block_until_ready((y_fast, y_kernel))

    # forward() is identity — verify exact reproduction on both paths.
    assert y_fast.shape == x.shape and y_fast.dtype == x.dtype
    assert y_kernel.shape == x.shape and y_kernel.dtype == x.dtype
    assert bool(jnp.all(y_fast == x))
    assert bool(jnp.all(y_kernel == x))
    print("KERNEL_OK")
</pallas_src>

<mosaic_0001>
module attributes {stable_mosaic.version = 11 : i64} {
  func.func @_identity_kernel(%arg0: i32, %arg1: memref<1x2048xf32, #tpu.memory_space<vmem>>, %arg2: memref<1x2048xf32, #tpu.memory_space<vmem>>) attributes {dimension_semantics = [#tpu.dimension_semantics<parallel>], iteration_bounds = array<i64: 1>, scalar_prefetch = 0 : i64, scratch_operands = 0 : i64, tpu.core_type = #tpu.core_type<tc>, window_params = [{transform_indices = @transform_0, window_bounds = array<i64: 1, 2048>}, {transform_indices = @transform_1, window_bounds = array<i64: 1, 2048>}]} {
    %c0 = arith.constant 0 : index
    %c0_0 = arith.constant 0 : index
    %0 = vector.load %arg1[%c0, %c0_0] : memref<1x2048xf32, #tpu.memory_space<vmem>>, vector<1x2048xf32>
    %c0_1 = arith.constant 0 : index
    %c0_2 = arith.constant 0 : index
    %1 = vector.load %arg2[%c0_1, %c0_2] : memref<1x2048xf32, #tpu.memory_space<vmem>>, vector<1x2048xf32>
    tpu.vector_store %arg2[%c0_1, %c0_2], %0 {strides = array<i32>} : memref<1x2048xf32, #tpu.memory_space<vmem>>, vector<1x2048xf32>,
    return
  }
  func.func @transform_0(%arg0: i32) -> (i32, i32) {
    %c0_i32 = arith.constant 0 : i32
    %c0_i32_0 = arith.constant 0 : i32
    return %arg0, %c0_i32 : i32, i32
  }
  func.func @transform_1(%arg0: i32) -> (i32, i32) {
    %c0_i32 = arith.constant 0 : i32
    %c0_i32_0 = arith.constant 0 : i32
    return %arg0, %c0_i32 : i32, i32
  }
}

</mosaic_0001>

<llo_original>
// kernel: tpu_custom_call.1
$region0: #{tpu_custom_call.1}
  #allocation0 [shape = 'u32[]', space=smem, size = 0x4, offset = 0x4, fixed_abs, tag = 'smem constant byte address 0x4 - core index']
  #allocation1 [shape = 'u32[144,128]{1,0:T(1,128)}', space=vmem, size = 0x12000, scoped, tag = 'internal scratch']
  %s0 = inlined_call_operand.hbm [shape: f32[1,2048], index: 0, kind: input, shape index: {}, may-alias: {0,1}]
  %s1 = inlined_call_operand.hbm [shape: f32[1,2048], index: 1, kind: output, shape index: {}, may-alias: {0,1}]
  %s2 = sld [smem:[#allocation0]]
  $region18: #{tpu_custom_call.1} parent=0
    _
  %s4 = ssub.s32 1, %s2
  %s5 = scalar_select 0, %s4, %s2
  $region1: #{tpu_custom_call.1} parent=0
    #allocation2 [shape = 'u8[8192]{0}', space=vmem, size = 0x2000, scoped, tag = 'input window, operand 0, single buffered']
    #allocation3 [shape = 's32[1]{0}', space=sflag, size = 0x4, scoped, tag = 'scoped memory for tpu_custom_call.1']
    #allocation4 [shape = 's32[1]{0}', space=sflag, size = 0x4, scoped, tag = 'scoped memory for tpu_custom_call.1']
    #allocation5 [shape = 'u8[8192]{0}', space=vmem, size = 0x2000, scoped, tag = 'output window, operand 0, single buffered']
    %6 = vsyncpa [#allocation3], 0
    %7 = vsyncpa [#allocation4], 0
    // Predicated region
    $region2: #{tpu_custom_call.1} parent=1 // pred_check
      _
    $region3: #{tpu_custom_call.1} parent=1 // pred_check_branch
      %9 = sbr.rel (0) target = $region5
    $region4: #{tpu_custom_call.1} parent=1 // pred_region
      %s11 = ssub.s32 256, 256
      %12 = vsyncadd [#allocation3], %s11
      %s14 = sshll.u32 [#allocation2], 4
      %s15 = int_to_ptr.vmem [resolvable:$true] %s14
      %17 = dma.hbm_to_vmem [thread:$0]  %s0, 256, %s15, [#allocation3]
    $region5: #{tpu_custom_call.1} parent=1 // pred_fallthru
      _
    // Predicated region
    $region6: #{tpu_custom_call.1} parent=1 // pred_check
      _
    $region7: #{tpu_custom_call.1} parent=1 // pred_check_branch
      %19 = sbr.rel (0) target = $region9
    $region8: #{tpu_custom_call.1} parent=1 // pred_region
      %20 = dma.done [#allocation3], 256
    $region9: #{tpu_custom_call.1} parent=1 // pred_fallthru
      _
    %v21 = vld [vmem:[#allocation2] sm:$0xff]
    %v22 = vld [vmem:[#allocation2 + $0x8] sm:$0xff]
    %23 = vst [vmem:[#allocation5] sm:$0xff] %v21
    %24 = vst [vmem:[#allocation5 + $0x8] sm:$0xff] %v22
    // Predicated region
    $region10: #{tpu_custom_call.1} parent=1 // pred_check
      _
    $region11: #{tpu_custom_call.1} parent=1 // pred_check_branch
      %26 = sbr.rel (0) target = $region13
    $region12: #{tpu_custom_call.1} parent=1 // pred_region
      %s28 = ssub.s32 256, 256
      %29 = vsyncadd [#allocation4], %s28
      %s31 = sshll.u32 [#allocation5], 4
      %s32 = int_to_ptr.vmem [resolvable:$true] %s31
      %34 = dma.vmem_to_hbm [thread:$0]  %s32, 256, %s1, [#allocation4]
    $region13: #{tpu_custom_call.1} parent=1 // pred_fallthru
      _
    // Predicated region
    $region14: #{tpu_custom_call.1} parent=1 // pred_check
      _
    $region15: #{tpu_custom_call.1} parent=1 // pred_check_branch
      %36 = sbr.rel (0) target = $region17
    $region16: #{tpu_custom_call.1} parent=1 // pred_region
      %37 = dma.done [#allocation4], 256
    $region17: #{tpu_custom_call.1} parent=1 // pred_fallthru
      _
    %38 = vsyncpa [#allocation3], 1
    %39 = vsyncpa [#allocation4], 1

</llo_original>
